<compile_context>
chip_gen: v7x
topology: tpu7x:2x2x1
jax: 0.10.0
libtpu: 0.0.40
codegen_flags: <defaults>
</compile_context>

<pallas_src>
import numpy as np
import jax
import jax.numpy as jnp
from jax.experimental import pallas as pl
from jax.experimental.pallas import tpu as pltpu


# ----------------------------------------------------------------------------- kernel

def _summer_pe1d_kernel(freq_ref, off_ref, x_ref, o_ref, emb_ref):
    """out = x + PositionalEncoding1D(x) for one (x-tile, batch-tile) grid step.

    freq_ref : (1, W)       f32 per-lane frequency  (= k * inv_freq[c // 2])
    off_ref  : (1, W)       f32 per-lane offset     (= j * inv_freq[c // 2] + (c % 2) * pi/2)
                            so that sin(row * freq + off) reproduces the library's
                            interleaved [sin, cos, sin, cos, ...] layout directly.
    x_ref    : (tB, tX, W)  input tile (lane-dense packed layout)
    o_ref    : (tB, tX, W)  output tile
    emb_ref  : (1, tX, W)   f32 scratch: encoding for this x-tile, computed only on the
                            first batch step and reused for all later batch steps.
    """
    _, tX, W = emb_ref.shape
    # NOTE: program_id must be read OUTSIDE the pl.when body (no lowering rule for
    # program_id inside a cond branch on the interpret/CPU path).
    xi = pl.program_id(0)
    bi = pl.program_id(1)

    @pl.when(bi == 0)
    def _():
        rows = jax.lax.broadcasted_iota(jnp.int32, (1, tX, W), 1) + xi * tX
        emb_ref[...] = jnp.sin(rows.astype(jnp.float32) * freq_ref[...] + off_ref[...])

    # Fused Summer residual add; emb is cast to the tensor dtype before the add, matching
    # the PyTorch module (its emb buffer is created in tensor.dtype).
    o_ref[...] = x_ref[...] + emb_ref[...].astype(x_ref.dtype)


# ----------------------------------------------------------------------------- params

def _inv_freq(ch: int) -> np.ndarray:
    """inv_freq of PositionalEncoding1D.__init__ (channels padded to even)."""
    channels = int(np.ceil(ch / 2) * 2)
    return (1.0 / (10000.0 ** (np.arange(0, channels, 2, dtype=np.float64) / channels))
            ).astype(np.float32)


def _pe1d_tables(ch: int, k: int):
    """Per-lane frequency / phase-offset tables for the lane-packed layout.

    Lane l of the packed width W = k*ch maps to original channel c = l % ch and
    sub-position j = l // ch; row r of the packed layout maps to position r*k + j.
      penc[pos, c] = sin(pos * inv_freq[c//2] + (c % 2) * pi/2)
                   = sin(r * (k * f_c)  +  (j * f_c + phase_c))
    """
    f_c = np.repeat(_inv_freq(ch).astype(np.float64), 2)[:ch]          # (ch,)
    phase_c = np.where(np.arange(ch) % 2 == 0, 0.0, np.pi / 2.0)        # sin / cos
    lanes = np.arange(k * ch)
    c = lanes % ch
    j = lanes // ch
    freq_w = (k * f_c[c]).astype(np.float32).reshape(1, k * ch)
    off_w = (j * f_c[c] + phase_c[c]).astype(np.float32).reshape(1, k * ch)
    return jnp.asarray(freq_w), jnp.asarray(off_w)


# ----------------------------------------------------------------------------- tiling

def _choose_tiles(B: int, Xr: int, W: int, itemsize: int):
    """Pick (tB, tX): tX a multiple of 8 dividing Xr (or the full axis), tB dividing B.

    Targets ~4 MiB of input per grid step (amortizes per-step overhead on all
    generations), caps the f32 emb scratch at ~2 MiB, and keeps >= 2 x-blocks when Xr
    allows it so the "parallel" axis can shard across v7x's two TensorCores.
    """
    row_bytes = W * itemsize
    if Xr % 8 != 0 or Xr <= 8:
        tX = Xr                                   # full axis as one block (always legal)
    else:
        max_rows = max(8, ((2 << 20) // (W * 4)) // 8 * 8)   # scratch <= ~2 MiB
        tX = max(8, (min(Xr, max_rows) // 8) * 8)
        while Xr % tX:
            tX -= 8
        if Xr // tX < 2:                          # keep >= 2 blocks on the parallel axis
            t = (Xr // 2 // 8) * 8
            while t >= 8 and Xr % t:
                t -= 8
            if t >= 8:
                tX = t
    # Grow the batch block so each grid step moves a few MiB (scratch unaffected).
    target = 4 << 20
    tB = max(1, min(B, target // max(1, tX * row_bytes)))
    while B % tB:
        tB -= 1
    return tB, tX


# ----------------------------------------------------------------------------- wrapper

def summer_positional_encoding_1d(tensor: jnp.ndarray) -> jnp.ndarray:
    """Forward pass of Summer(PositionalEncoding1D(ch)): returns tensor + penc(tensor)."""
    if tensor.ndim != 3:
        raise RuntimeError("The input tensor has to be 3d!")
    B, X, ch = tensor.shape
    itemsize = tensor.dtype.itemsize

    # Lane-dense packing: (B, X, ch) -> (B, X//k, k*ch) with k*ch == 128 when possible.
    if 0 < ch < 128 and 128 % ch == 0 and X % (128 // ch) == 0:
        k = 128 // ch
    else:
        k = 1
    Xr0, W = X // k, k * ch
    x_p = tensor.reshape(B, Xr0, W)               # free: contiguous trailing dims

    # Harden the unaligned-x case: pad to a sublane multiple instead of loading one
    # huge block when a single full block would be large.
    Xr, pad = Xr0, 0
    if Xr % 8 != 0 and Xr * W * itemsize > (4 << 20):
        pad = (-Xr) % 8
        x_p = jnp.pad(x_p, ((0, 0), (0, pad), (0, 0)))
        Xr += pad

    freq_w, off_w = _pe1d_tables(ch, k)
    tB, tX = _choose_tiles(B, Xr, W, itemsize)
    grid = (Xr // tX, B // tB)

    # VMEM budget: double-buffered input + output blocks, f32 scratch, tiny tables.
    in_block = tB * tX * W * itemsize
    vmem_need = 4 * in_block + tX * W * 4 + 4 * W * 4 + (2 << 20)
    vmem_limit = int(min(max(vmem_need, 16 << 20), 48 << 20))

    out = pl.pallas_call(
        _summer_pe1d_kernel,
        out_shape=jax.ShapeDtypeStruct((B, Xr, W), tensor.dtype),
        grid_spec=pltpu.PrefetchScalarGridSpec(
            num_scalar_prefetch=0,
            grid=grid,
            in_specs=[
                # Tiny per-lane tables: same block every step -> fetched once.
                pl.BlockSpec((1, W), lambda xi, bi: (0, 0)),
                pl.BlockSpec((1, W), lambda xi, bi: (0, 0)),
                # Input tile for the fused residual add.
                pl.BlockSpec((tB, tX, W), lambda xi, bi: (bi, xi, 0)),
            ],
            out_specs=pl.BlockSpec((tB, tX, W), lambda xi, bi: (bi, xi, 0)),
            scratch_shapes=[pltpu.VMEM((1, tX, W), jnp.float32)],
        ),
        compiler_params=pltpu.CompilerParams(
            # x-tile axis "parallel" (megacore sharding).  Batch axis MUST stay the
            # innermost, sequential, "arbitrary" axis: the emb scratch written at
            # bi == 0 is reused for every later batch tile of the same x-tile.
            dimension_semantics=("parallel", "arbitrary"),
            vmem_limit_bytes=vmem_limit,
        ),
    )(freq_w, off_w, x_p)

    if pad:
        out = out[:, :Xr0, :]
    return out.reshape(B, X, ch)


# ----------------------------------------------------------------------------- reference

def _reference(tensor: jnp.ndarray) -> jnp.ndarray:
    """Pure-JAX reference mirroring the PyTorch Summer(PositionalEncoding1D) forward."""
    B, X, ch = tensor.shape
    inv_freq = jnp.asarray(_inv_freq(ch))
    pos = jnp.arange(X, dtype=jnp.float32)
    sin_inp = jnp.einsum("i,j->ij", pos, inv_freq)                      # (X, half)
    emb = jnp.stack([jnp.sin(sin_inp), jnp.cos(sin_inp)], axis=-1)      # (X, half, 2)
    emb = emb.reshape(X, -1)[:, :ch]                                    # interleaved
    return tensor + emb.astype(tensor.dtype)[None, :, :]


if __name__ == "__main__":
    key = jax.random.PRNGKey(0)
    batch, x_len, ch = 2, 16, 32   # (batch_size, x, ch)

    tensor = jax.random.normal(key, (batch, x_len, ch), dtype=jnp.float32)

    out = jax.block_until_ready(summer_positional_encoding_1d(tensor))

    ref = _reference(tensor)
    np.testing.assert_allclose(np.asarray(out), np.asarray(ref), rtol=1e-4, atol=1e-4)

    print("KERNEL_OK")
</pallas_src>

<mosaic_0001>
module attributes {stable_mosaic.version = 11 : i64} {
  func.func @_summer_pe1d_kernel(%arg0: i32, %arg1: i32, %arg2: memref<1x128xf32, #tpu.memory_space<vmem>>, %arg3: memref<1x128xf32, #tpu.memory_space<vmem>>, %arg4: memref<2x4x128xf32, #tpu.memory_space<vmem>>, %arg5: memref<2x4x128xf32, #tpu.memory_space<vmem>>, %arg6: memref<1x4x128xf32, #tpu.memory_space<vmem>>) attributes {dimension_semantics = [#tpu.dimension_semantics<parallel>, #tpu.dimension_semantics<arbitrary>], iteration_bounds = array<i64: 1, 1>, scalar_prefetch = 0 : i64, scratch_operands = 1 : i64, tpu.core_type = #tpu.core_type<tc>, window_params = [{pipeline_mode = #tpu.pipeline_mode<synchronous>, transform_indices = @transform_0, window_bounds = array<i64: 1, 128>}, {pipeline_mode = #tpu.pipeline_mode<synchronous>, transform_indices = @transform_1, window_bounds = array<i64: 1, 128>}, {transform_indices = @transform_2, window_bounds = array<i64: 2, 4, 128>}, {transform_indices = @transform_3, window_bounds = array<i64: 2, 4, 128>}]} {
    %c0_i32 = arith.constant 0 : i32
    %0 = arith.cmpi eq, %arg1, %c0_i32 : i32
    %1 = arith.extui %0 : i1 to i32
    %c0_i32_0 = arith.constant 0 : i32
    %2 = arith.cmpi ne, %1, %c0_i32_0 : i32
    scf.if %2 {
      %8 = tpu.iota {dimensions = array<i32: 1>} : vector<1x4x128xi32>
      %c4_i32 = arith.constant 4 : i32
      %9 = arith.muli %arg0, %c4_i32 : i32
      %10 = vector.broadcast %9 : i32 to vector<1x4x128xi32>
      %11 = arith.addi %8, %10 : vector<1x4x128xi32>
      %12 = arith.sitofp %11 : vector<1x4x128xi32> to vector<1x4x128xf32>
      %c0_9 = arith.constant 0 : index
      %c0_10 = arith.constant 0 : index
      %13 = vector.load %arg2[%c0_9, %c0_10] : memref<1x128xf32, #tpu.memory_space<vmem>>, vector<1x128xf32>
      %14 = vector.shape_cast %13 : vector<1x128xf32> to vector<1x1x128xf32>
      %15 = vector.broadcast %14 : vector<1x1x128xf32> to vector<1x4x128xf32>
      %16 = arith.mulf %12, %15 : vector<1x4x128xf32>
      %c0_11 = arith.constant 0 : index
      %c0_12 = arith.constant 0 : index
      %17 = vector.load %arg3[%c0_11, %c0_12] : memref<1x128xf32, #tpu.memory_space<vmem>>, vector<1x128xf32>
      %18 = vector.shape_cast %17 : vector<1x128xf32> to vector<1x1x128xf32>
      %19 = vector.broadcast %18 : vector<1x1x128xf32> to vector<1x4x128xf32>
      %20 = arith.addf %16, %19 : vector<1x4x128xf32>
      %21 = math.sin %20 : vector<1x4x128xf32>
      %c0_13 = arith.constant 0 : index
      %c0_14 = arith.constant 0 : index
      %c0_15 = arith.constant 0 : index
      %22 = vector.load %arg6[%c0_13, %c0_14, %c0_15] : memref<1x4x128xf32, #tpu.memory_space<vmem>>, vector<1x4x128xf32>
      tpu.vector_store %arg6[%c0_13, %c0_14, %c0_15], %21 {strides = array<i32>} : memref<1x4x128xf32, #tpu.memory_space<vmem>>, vector<1x4x128xf32>,
    } else {
    }
    %c0 = arith.constant 0 : index
    %c0_1 = arith.constant 0 : index
    %c0_2 = arith.constant 0 : index
    %3 = vector.load %arg4[%c0, %c0_1, %c0_2] : memref<2x4x128xf32, #tpu.memory_space<vmem>>, vector<2x4x128xf32>
    %c0_3 = arith.constant 0 : index
    %c0_4 = arith.constant 0 : index
    %c0_5 = arith.constant 0 : index
    %4 = vector.load %arg6[%c0_3, %c0_4, %c0_5] : memref<1x4x128xf32, #tpu.memory_space<vmem>>, vector<1x4x128xf32>
    %5 = vector.broadcast %4 : vector<1x4x128xf32> to vector<2x4x128xf32>
    %6 = arith.addf %3, %5 : vector<2x4x128xf32>
    %c0_6 = arith.constant 0 : index
    %c0_7 = arith.constant 0 : index
    %c0_8 = arith.constant 0 : index
    %7 = vector.load %arg5[%c0_6, %c0_7, %c0_8] : memref<2x4x128xf32, #tpu.memory_space<vmem>>, vector<2x4x128xf32>
    tpu.vector_store %arg5[%c0_6, %c0_7, %c0_8], %6 {strides = array<i32>} : memref<2x4x128xf32, #tpu.memory_space<vmem>>, vector<2x4x128xf32>,
    return
  }
  func.func @transform_0(%arg0: i32, %arg1: i32) -> (i32, i32) {
    %c0_i32 = arith.constant 0 : i32
    %c0_i32_0 = arith.constant 0 : i32
    %c0_i32_1 = arith.constant 0 : i32
    return %c0_i32, %c0_i32_0 : i32, i32
  }
  func.func @transform_1(%arg0: i32, %arg1: i32) -> (i32, i32) {
    %c0_i32 = arith.constant 0 : i32
    %c0_i32_0 = arith.constant 0 : i32
    %c0_i32_1 = arith.constant 0 : i32
    return %c0_i32, %c0_i32_0 : i32, i32
  }
  func.func @transform_2(%arg0: i32, %arg1: i32) -> (i32, i32, i32) {
    %c0_i32 = arith.constant 0 : i32
    %c0_i32_0 = arith.constant 0 : i32
    return %arg1, %arg0, %c0_i32 : i32, i32, i32
  }
  func.func @transform_3(%arg0: i32, %arg1: i32) -> (i32, i32, i32) {
    %c0_i32 = arith.constant 0 : i32
    %c0_i32_0 = arith.constant 0 : i32
    return %arg1, %arg0, %c0_i32 : i32, i32, i32
  }
}

</mosaic_0001>

<llo_original>
// kernel: tpu_custom_call.1
$region0: #{tpu_custom_call.1}
  #allocation0 [shape = 'u32[]', space=smem, size = 0x4, offset = 0x4, fixed_abs, tag = 'smem constant byte address 0x4 - core index']
  #allocation1 [shape = 'u32[144,128]{1,0:T(1,128)}', space=vmem, size = 0x12000, scoped, tag = 'internal scratch']
  #allocation2 [shape = 'f32[1,4,128]{2,1,0:T(4,128)}', space=vmem, size = 0x800, scoped, tag = 'scratch operand']
  %s0 = inlined_call_operand.hbm [shape: f32[1,128], index: 0, kind: input, shape index: {}]
  %s1 = inlined_call_operand.vmem [shape: f32[1,128], index: 1, kind: input, shape index: {}]
  %s2 = inlined_call_operand.hbm [shape: f32[2,4,128], index: 2, kind: input, shape index: {}]
  %s3 = inlined_call_operand.hbm [shape: f32[2,4,128], index: 3, kind: output, shape index: {}]
  %s4 = sld [smem:[#allocation0]]
  $region34: #{tpu_custom_call.1} parent=0
    _
  %s6 = ssub.s32 1, %s4
  %s7 = scalar_select 0, %s6, %s4
  $region1: #{tpu_custom_call.1} parent=0
    #allocation3 [shape = 'u8[512]{0}', space=vmem, size = 0x400, scoped, tag = 'input window, operand 0, single buffered']
    #allocation4 [shape = 's32[1]{0}', space=sflag, size = 0x4, scoped, tag = 'scoped memory for tpu_custom_call.1']
    #allocation5 [shape = 's32[1]{0}', space=sflag, size = 0x4, scoped, tag = 'scoped memory for tpu_custom_call.1']
    #allocation6 [shape = 'u8[4096]{0}', space=vmem, size = 0x1000, scoped, tag = 'input window, operand 2, single buffered']
    #allocation7 [shape = 's32[1]{0}', space=sflag, size = 0x4, scoped, tag = 'scoped memory for tpu_custom_call.1']
    #allocation8 [shape = 'u8[4096]{0}', space=vmem, size = 0x1000, scoped, tag = 'output window, operand 0, single buffered']
    %8 = vsyncpa [#allocation4], 0
    %9 = vsyncpa [#allocation7], 0
    %10 = vsyncpa [#allocation5], 0
    // Predicated region
    $region2: #{tpu_custom_call.1} parent=1 // pred_check
      _
    $region3: #{tpu_custom_call.1} parent=1 // pred_check_branch
      %12 = sbr.rel (0) target = $region5
    $region4: #{tpu_custom_call.1} parent=1 // pred_region
      %s14 = ssub.s32 16, 16
      %15 = vsyncadd [#allocation4], %s14
      %s17 = sshll.u32 [#allocation3], 4
      %s18 = int_to_ptr.vmem [resolvable:$true] %s17
      %20 = dma.hbm_to_vmem [thread:$0]  %s0, 16, %s18, [#allocation4]
    $region5: #{tpu_custom_call.1} parent=1 // pred_fallthru
      _
    // Predicated region
    $region6: #{tpu_custom_call.1} parent=1 // pred_check
      _
    $region7: #{tpu_custom_call.1} parent=1 // pred_check_branch
      %22 = sbr.rel (0) target = $region9
    $region8: #{tpu_custom_call.1} parent=1 // pred_region
      _
    $region9: #{tpu_custom_call.1} parent=1 // pred_fallthru
      _
    // Predicated region
    $region10: #{tpu_custom_call.1} parent=1 // pred_check
      _
    $region11: #{tpu_custom_call.1} parent=1 // pred_check_branch
      %24 = sbr.rel (0) target = $region13
    $region12: #{tpu_custom_call.1} parent=1 // pred_region
      %s26 = ssub.s32 128, 128
      %27 = vsyncadd [#allocation7], %s26
      %s28 = sshll.u32 [#allocation6], 4
      %s29 = int_to_ptr.vmem [resolvable:$true] %s28
      %34 = dma.hbm_to_vmem [thread:$0]  %s2, 128, %s29, [#allocation7], 64, 64, 4
    $region13: #{tpu_custom_call.1} parent=1 // pred_fallthru
      _
    // Predicated region
    $region14: #{tpu_custom_call.1} parent=1 // pred_check
      _
    $region15: #{tpu_custom_call.1} parent=1 // pred_check_branch
      %36 = sbr.rel (0) target = $region17
    $region16: #{tpu_custom_call.1} parent=1 // pred_region
      %37 = dma.done [#allocation4], 16
    $region17: #{tpu_custom_call.1} parent=1 // pred_fallthru
      _
    // Predicated region
    $region18: #{tpu_custom_call.1} parent=1 // pred_check
      _
    $region19: #{tpu_custom_call.1} parent=1 // pred_check_branch
      %39 = sbr.rel (0) target = $region21
    $region20: #{tpu_custom_call.1} parent=1 // pred_region
      %40 = dma.done [#allocation7], 128
    $region21: #{tpu_custom_call.1} parent=1 // pred_fallthru
      _
    %p41 = scmp.eq.s32.totalorder 0, 0
    // Predicated region
    $region22: #{tpu_custom_call.1} parent=1 // pred_check
      %p42 = pneg %p41
    $region23: #{tpu_custom_call.1} parent=1 // pred_check_branch
      %44 = sbr.rel (%p42) target = $region25
    $region24: #{tpu_custom_call.1} parent=1 // pred_region
      %v45 = vlaneseq
      %v46 = vshrl.u32 %v45, 7
      %s47 = smul.u32 0, 4
      %v48 = vstv %s47
      %v49 = vadd.s32 %v46, %v48
      %v50 = vcvt.s32.f32 %v49
      %v51 = vld [vmem:[#allocation3] sm:$0x1]
      %v53 = vlaneseq
      %v54 = vshrl.u32 %v53, 7
      %v55 = vsub.s32 0, %v54
      %v56 = vrot.slane %v51, %v55
      %v58 = vmul.f32 %v50, %v56
      %v59 = vld [vmem:[%s1] sm:$0x1]
      %v61 = vlaneseq
      %v62 = vshrl.u32 %v61, 7
      %v63 = vsub.s32 0, %v62
      %v64 = vrot.slane %v59, %v63
      %v66 = vadd.f32 %v58, %v64
      %v67 = vand.u32 2147483647, %v66
      %vm68 = vcmp.le.f32.partialorder %v67, 0.7853982
      %vm69 = vcmp.lt.s32.totalorder %v66, 0
      %v70 = vand.u32 %v66, 2139095040
      %v71 = vshrl.u32 %v70, 23
      %v72 = vsub.s32 %v71, 127
      %v73 = vand.u32 2147483647, %v66
      %v74 = vand.u32 %v73, 8388607
      %v75 = vor.u32 %v74, 8388608
      %v76 = vsub.s32 0, %v75
      %v77 = vadd.s32 %v72, 1
      %vm78 = vcmp.gt.s32.totalorder %v77, 0
      %v79 = vsel %vm78, %v77, 0
      %v80 = vshrl.u32 %v79, 5
      %v81 = vand.u32 %v79, 31
      %v82 = vsub.s32 32, %v81
      %v83 = vshrl.u32 683565275, %v82
      %v84 = vshll.u32 683565275, %v81
      %v85 = vshrl.u32 2475754826, %v82
      %v86 = vor.u32 %v84, %v85
      %v87 = vshll.u32 2475754826, %v81
      %v88 = vshrl.u32 2131351028, %v82
      %v89 = vor.u32 %v87, %v88
      %v90 = vshll.u32 2131351028, %v81
      %v91 = vshrl.u32 2102212464, %v82
      %v92 = vor.u32 %v90, %v91
      %v93 = vshll.u32 2102212464, %v81
      %v94 = vshrl.u32 920167782, %v82
      %v95 = vor.u32 %v93, %v94
      %v96 = vshll.u32 920167782, %v81
      %v97 = vshrl.u32 1326507024, %v82
      %v98 = vor.u32 %v96, %v97
      %vm99 = vcmp.lt.s32.totalorder %v80, 1
      %vm100 = vcmp.lt.s32.totalorder %v80, 2
      %vm101 = vcmp.lt.s32.totalorder %v80, 3
      %vm102 = vcmp.lt.s32.totalorder %v80, 4
      %v103 = vsel %vm99, %v83, %v86
      %v104 = vsel %vm102, %v92, 2102212464
      %v105 = vsel %vm101, %v89, %v104
      %v106 = vsel %vm100, %v103, %v105
      %v107 = vsel %vm99, %v86, %v89
      %v108 = vsel %vm102, %v95, 920167782
      %v109 = vsel %vm101, %v92, %v108
      %v110 = vsel %vm100, %v107, %v109
      %v111 = vsel %vm99, %v89, %v92
      %v112 = vsel %vm102, %v98, 1326507024
      %v113 = vsel %vm101, %v95, %v112
      %v114 = vsel %vm100, %v111, %v113
      %v115 = vshll.u32 %v75, 8
      %v116 = vmul.u32.u64.compose %v115, %v114
      %v117 = vextract.low.u32 %v116
      %v118 = vextract.high.u32 %v116
      %v119 = vmul.u32.u64.compose %v115, %v110
      %v120 = vextract.low.u32 %v119
      %v121 = vextract.high.u32 %v119
      %v122 = vmul.u32 %v115, %v106
      %v123 = vadd.s32 %v118, %v120
      %vm124 = vc.u32 %v118, %v120
      %v125 = vadd.s32 %v121, 1
      %v126 = vsel %vm124, %v125, %v121
      %v127 = vadd.s32 %v122, %v126
      %v128 = vadd.s32 %v127, 536870912
      %v129 = vshrl.u32 %v128, 30
      %v130 = vshll.u32 %v129, 30
      %v131 = vsub.s32 %v127, %v130
      %vm132 = vcmp.lt.s32.totalorder %v131, 0
      %v133 = vsub.s32 0, %v131
      %v134 = vsel %vm132, %v133, %v131
      %v135 = vclz %v134
      %v136 = vsub.s32 %v135, 2
      %vm137 = vcmp.gt.s32.totalorder 0, %v136
      %v138 = vsel %vm137, 0, %v136
      %v139 = vsub.s32 32, %v138
      %v140 = vshll.u32 %v131, %v138
      %v141 = vshrl.u32 %v123, %v139
      %v142 = vor.u32 %v140, %v141
      %v143 = vsub.s32 4294967266, %v138
      %v144 = vadd.s32 %v143, 127
      %v145 = vshll.u32 %v144, 23
      %v146 = vor.u32 4788187, %v145
      %v147 = vand.u32 2147483647, %v146
      %v149 = vcvt.s32.f32 %v142
      %v150 = vmul.f32 %v149, %v147
      %v151 = vxor.u32 %v150, 2147483648
      %v152 = vsel %vm69, %v151, %v150
      %v153 = vsub.s32 4, %v129
      %v154 = vsel %vm69, %v153, %v129
      %v155 = vsel %vm68, %v66, %v152
      %v156 = vsel %vm68, 0, %v154
      %v157 = vcosq.f32.pop %v155
      %v158 = vsinq.f32.pop %v155
      %vm159 = vweird.f32 %v66
      %v160 = vadd.s32 %v156, 3
      %v161 = vand.u32 %v160, 3
      %vm162 = vcmp.lt.s32.totalorder %v161, 2
      %vm163 = vcmp.eq.s32.totalorder %v161, 0
      %v164 = vxor.u32 %v158, 2147483648
      %v165 = vsel %vm163, %v157, %v164
      %vm166 = vcmp.eq.s32.totalorder %v161, 2
      %v167 = vxor.u32 %v157, 2147483648
      %v168 = vsel %vm166, %v167, %v158
      %v169 = vsel %vm162, %v165, %v168
      %v170 = vsel %vm159, nan, %v169
      %171 = vst [vmem:[#allocation2] sm:$0xf] %v170
    $region25: #{tpu_custom_call.1} parent=1 // pred_fallthru
      _
    %v172 = vld [vmem:[#allocation6] sm:$0xf]
    %v173 = vld [vmem:[#allocation6 + $0x4] sm:$0xf]
    %v174 = vld [vmem:[#allocation2] sm:$0xf]
    %v175 = vadd.f32 %v172, %v174
    %v176 = vadd.f32 %v173, %v174
    %177 = vst [vmem:[#allocation8] sm:$0xf] %v175
    %178 = vst [vmem:[#allocation8 + $0x4] sm:$0xf] %v176
    // Predicated region
    $region26: #{tpu_custom_call.1} parent=1 // pred_check
      _
    $region27: #{tpu_custom_call.1} parent=1 // pred_check_branch
      %180 = sbr.rel (0) target = $region29
    $region28: #{tpu_custom_call.1} parent=1 // pred_region
      %s182 = ssub.s32 128, 128
      %183 = vsyncadd [#allocation5], %s182
      %s184 = sshll.u32 [#allocation8], 4
      %s185 = int_to_ptr.vmem [resolvable:$true] %s184
      %190 = dma.vmem_to_hbm [thread:$0]  %s185, 128, %s3, [#allocation5], 64, 64, 4
    $region29: #{tpu_custom_call.1} parent=1 // pred_fallthru
      _
    // Predicated region
    $region30: #{tpu_custom_call.1} parent=1 // pred_check
      _
    $region31: #{tpu_custom_call.1} parent=1 // pred_check_branch
      %192 = sbr.rel (0) target = $region33
    $region32: #{tpu_custom_call.1} parent=1 // pred_region
      %193 = dma.done [#allocation5], 128
    $region33: #{tpu_custom_call.1} parent=1 // pred_fallthru
      _
    %194 = vsyncpa [#allocation4], 1
    %195 = vsyncpa [#allocation7], 1
    %196 = vsyncpa [#allocation5], 1

</llo_original>
